<compile_context>
chip_gen: v7x
topology: tpu7x:2x2x1
jax: 0.10.0
libtpu: 0.0.40
codegen_flags: <defaults>
</compile_context>

<pallas_src>
import functools

import jax
import jax.numpy as jnp
from jax import lax
from jax.experimental import pallas as pl
from jax.experimental.pallas import tpu as pltpu


def _attention_kernel(x_ref, w_ref, b_ref, o_ref, m_ref, l_ref, acc_ref, *,
                      seq_chunk):
    # x_ref  : (TB, S, H)  streamed input tile (input dtype)
    # w_ref  : (1, H)      resident VMEM weight row (nn.Linear(H, 1).weight)
    # b_ref  : (1,)        bias scalar in SMEM
    # o_ref  : (TB, H)     lane-dense output tile
    # m_ref  : (TB, 1) f32 running max            (VMEM scratch)
    # l_ref  : (TB, 1) f32 running softmax denom  (VMEM scratch)
    # acc_ref: (TB, H) f32 unnormalized context   (VMEM scratch)
    _, seq, _ = x_ref.shape
    sc = seq_chunk
    nfull = seq // sc
    tail = seq - nfull * sc

    w = w_ref[...]                         # stays in input dtype (bf16 on v6e/v7x)
    b = b_ref[0].astype(jnp.float32)       # constant shift; kept for fidelity

    m_ref[...] = jnp.full(m_ref.shape, -jnp.inf, dtype=m_ref.dtype)
    l_ref[...] = jnp.zeros(l_ref.shape, dtype=l_ref.dtype)
    acc_ref[...] = jnp.zeros(acc_ref.shape, dtype=acc_ref.dtype)

    def process(xs):
        # One online-softmax update for a (TB, cur, H) chunk of x.
        # Multiply on the VPU in the input dtype, reduce over H in f32
        # (keeps the degenerate N=1 matmul off the MXU).
        s = jnp.sum(xs * w, axis=-1, dtype=jnp.float32) + b          # (TB, cur)
        m_prev = m_ref[...]                                          # (TB, 1)
        m_new = jnp.maximum(m_prev, jnp.max(s, axis=-1, keepdims=True))
        alpha = jnp.exp(m_prev - m_new)                              # (TB, 1)
        p = jnp.exp(s - m_new)                                       # (TB, cur)
        l_ref[...] = alpha * l_ref[...] + jnp.sum(p, axis=-1, keepdims=True)
        acc_ref[...] = alpha * acc_ref[...] + jnp.sum(
            p[:, :, None].astype(xs.dtype) * xs, axis=1, dtype=jnp.float32)
        m_ref[...] = m_new

    if nfull > 0:
        def body(c, carry):
            start = c * sc
            if sc % 8 == 0:
                start = pl.multiple_of(start, 8)      # aligned sublane slice
            process(x_ref[:, pl.ds(start, sc), :])
            return carry
        lax.fori_loop(0, nfull, body, 0, unroll=(nfull <= 8))

    if tail > 0:                                       # static tail chunk
        process(x_ref[:, pl.ds(nfull * sc, tail), :])

    # Exact division on the small (TB, H) result — negligible cost, no approx.
    o_ref[...] = (acc_ref[...] / l_ref[...]).astype(o_ref.dtype)


def _chip_budget():
    """(target x-tile bytes, VMEM-limit cap bytes), sized per TPU generation."""
    vmem_cap = 128 << 20
    try:
        vmem_cap = int(pltpu.get_tpu_info().vmem_capacity_bytes)
    except Exception:
        pass  # interpret mode / older runtime: assume v5e/v6e-class VMEM
    if vmem_cap <= (64 << 20):
        return 8 << 20, 40 << 20        # v7x: faster HBM -> bigger tiles, tight cap
    return 4 << 20, 64 << 20            # v5e / v6e: 128 MiB VMEM


def _pick_batch_tile(batch, seq, hidden, itemsize, target_bytes):
    """Largest 8-aligned batch tile whose x slab is ~target_bytes (capped at B)."""
    row_bytes = max(seq * hidden * itemsize, 1)
    tb = max(1, target_bytes // row_bytes)
    if tb >= batch:
        return batch
    if tb < 8:
        # TODO(synk): rows larger than the tile target would want a second grid
        # axis over S (online-softmax across grid steps); rounding up to 8 keeps
        # the (tb, H) output block (8,128)-legal for realistic shapes.
        tb = 8
    else:
        tb = (tb // 8) * 8
    return min(tb, batch, 4096)          # cap bounds the padded (tb,1) scratch


def _pick_seq_chunk(tb, seq, hidden, chunk_bytes=128 << 10):
    """Seq-chunk so per-chunk products stay a small, transient working set."""
    sc = max(1, chunk_bytes // max(tb * hidden * 4, 1))
    if sc >= seq:
        return seq
    if sc < 8:
        return 8 if seq > 8 else seq     # keep chunk starts sublane-aligned
    return (sc // 8) * 8


def attention_forward(x, w, b, *, batch_tile=None, seq_chunk=None):
    """x: (B, S, H); w: (1, H) (= nn.Linear(H, 1).weight); b: (1,) bias."""
    B, S, H = x.shape
    itemsize = jnp.dtype(x.dtype).itemsize
    x_target, vmem_cap = _chip_budget()

    tb = batch_tile if batch_tile is not None else _pick_batch_tile(
        B, S, H, itemsize, x_target)
    grid_b = pl.cdiv(B, tb)
    # Keep >= 2 grid steps when possible with 8-aligned tiles: overlaps DMA with
    # compute and lets v7x shard the "parallel" batch axis over both TCs.
    if grid_b == 1 and B >= 16:
        tb = max(8, ((pl.cdiv(B, 2) + 7) // 8) * 8)
        grid_b = pl.cdiv(B, tb)

    sc = seq_chunk if seq_chunk is not None else _pick_seq_chunk(tb, S, H)

    # VMEM budget: double-buffered x/out tiles, resident weight, f32 scratch
    # (acc + lane-padded m/l), transient per-chunk products, headroom.
    tile_bytes = tb * S * H * itemsize
    out_bytes = tb * H * itemsize
    scratch_bytes = tb * H * 4 + 2 * max(tb, 8) * 128 * 4
    chunk_work = 4 * tb * sc * H * 4
    vmem_limit = int(min(max(2 * (tile_bytes + out_bytes) + scratch_bytes
                             + chunk_work + H * itemsize + (4 << 20),
                             16 << 20),
                         vmem_cap))

    cost = pl.CostEstimate(
        flops=4 * B * S * H,
        transcendentals=2 * B * S,
        bytes_accessed=B * S * H * itemsize + B * H * itemsize + H * itemsize,
    )

    kernel = functools.partial(_attention_kernel, seq_chunk=sc)

    return pl.pallas_call(
        kernel,
        out_shape=jax.ShapeDtypeStruct((B, H), x.dtype),
        grid_spec=pltpu.PrefetchScalarGridSpec(
            num_scalar_prefetch=0,
            grid=(grid_b,),
            in_specs=[
                pl.BlockSpec((tb, S, H), lambda i: (i, 0, 0)),       # streamed x
                pl.BlockSpec((1, H), lambda i: (0, 0)),              # resident weight
                pl.BlockSpec(memory_space=pltpu.MemorySpace.SMEM),   # bias scalar
            ],
            out_specs=pl.BlockSpec((tb, H), lambda i: (i, 0)),       # lane-dense out
            scratch_shapes=[
                pltpu.VMEM((tb, 1), jnp.float32),    # running max
                pltpu.VMEM((tb, 1), jnp.float32),    # running denominator
                pltpu.VMEM((tb, H), jnp.float32),    # unnormalized context
            ],
        ),
        compiler_params=pltpu.CompilerParams(
            dimension_semantics=("parallel",),
            vmem_limit_bytes=vmem_limit,
        ),
        cost_estimate=cost,
    )(x, w, b)


def attention_reference(x, w, b):
    # Pure-JAX reference mirroring the PyTorch forward in exact f32 elementwise
    # math (no MXU low-precision dot), so the comparison isolates kernel error.
    scores = jnp.sum(x * w[0], axis=-1, keepdims=True) + b   # (B, S, 1)
    weights = jax.nn.softmax(scores, axis=1)                  # softmax over seq
    return jnp.sum(weights * x, axis=1)                       # (B, H)


if __name__ == "__main__":
    B, S, H = 2, 8, 32
    key = jax.random.PRNGKey(0)
    kx, kw, kb = jax.random.split(key, 3)

    x = jax.random.normal(kx, (B, S, H), dtype=jnp.float32)
    # Deterministic parameter init (shapes match nn.Linear(hidden_dim, 1)):
    w = jax.random.normal(kw, (1, H), dtype=jnp.float32) * (1.0 / jnp.sqrt(H))
    b = jax.random.normal(kb, (1,), dtype=jnp.float32) * 0.1

    out = jax.block_until_ready(attention_forward(x, w, b))
    ref = attention_reference(x, w, b)

    assert out.shape == (B, H)
    err = jnp.max(jnp.abs(out - ref))
    assert jnp.allclose(out, ref, atol=1e-4, rtol=1e-4), f"max abs err {err}"
    print("KERNEL_OK")
</pallas_src>

<mosaic_0001>
module attributes {stable_mosaic.version = 11 : i64} {
  func.func @_attention_kernel(%arg0: i32, %arg1: memref<2x8x32xf32, #tpu.memory_space<vmem>>, %arg2: memref<1x32xf32, #tpu.memory_space<vmem>>, %arg3: memref<1xf32, #tpu.memory_space<smem>>, %arg4: memref<2x32xf32, #tpu.memory_space<vmem>>, %arg5: memref<2x1xf32, #tpu.memory_space<vmem>>, %arg6: memref<2x1xf32, #tpu.memory_space<vmem>>, %arg7: memref<2x32xf32, #tpu.memory_space<vmem>>) attributes {dimension_semantics = [#tpu.dimension_semantics<parallel>], iteration_bounds = array<i64: 1>, scalar_prefetch = 0 : i64, scratch_operands = 3 : i64, tpu.core_type = #tpu.core_type<tc>, window_params = [{transform_indices = @transform_0, window_bounds = array<i64: 2, 8, 32>}, {pipeline_mode = #tpu.pipeline_mode<synchronous>, transform_indices = @transform_1, window_bounds = array<i64: 1, 32>}, {transform_indices = @transform_2, window_bounds = array<i64: 1>}, {transform_indices = @transform_3, window_bounds = array<i64: 2, 32>}]} {
    %c0 = arith.constant 0 : index
    %c0_0 = arith.constant 0 : index
    %0 = vector.load %arg2[%c0, %c0_0] : memref<1x32xf32, #tpu.memory_space<vmem>>, vector<1x32xf32>
    %c0_1 = arith.constant 0 : index
    %1 = memref.load %arg3[%c0_1] : memref<1xf32, #tpu.memory_space<smem>>
    %cst = arith.constant 0xFF800000 : f32
    %2 = vector.broadcast %cst : f32 to vector<2x1xf32>
    %c0_2 = arith.constant 0 : index
    %c0_3 = arith.constant 0 : index
    %3 = vector.load %arg5[%c0_2, %c0_3] : memref<2x1xf32, #tpu.memory_space<vmem>>, vector<2x1xf32>
    tpu.vector_store %arg5[%c0_2, %c0_3], %2 {strides = array<i32>} : memref<2x1xf32, #tpu.memory_space<vmem>>, vector<2x1xf32>,
    %cst_4 = arith.constant 0.000000e+00 : f32
    %4 = vector.broadcast %cst_4 : f32 to vector<2x1xf32>
    %c0_5 = arith.constant 0 : index
    %c0_6 = arith.constant 0 : index
    %5 = vector.load %arg6[%c0_5, %c0_6] : memref<2x1xf32, #tpu.memory_space<vmem>>, vector<2x1xf32>
    tpu.vector_store %arg6[%c0_5, %c0_6], %4 {strides = array<i32>} : memref<2x1xf32, #tpu.memory_space<vmem>>, vector<2x1xf32>,
    %cst_7 = arith.constant 0.000000e+00 : f32
    %6 = vector.broadcast %cst_7 : f32 to vector<2x32xf32>
    %c0_8 = arith.constant 0 : index
    %c0_9 = arith.constant 0 : index
    %7 = vector.load %arg7[%c0_8, %c0_9] : memref<2x32xf32, #tpu.memory_space<vmem>>, vector<2x32xf32>
    tpu.vector_store %arg7[%c0_8, %c0_9], %6 {strides = array<i32>} : memref<2x32xf32, #tpu.memory_space<vmem>>, vector<2x32xf32>,
    %c0_i32 = arith.constant 0 : i32
    %c8_i32 = arith.constant 8 : i32
    %8 = arith.muli %c0_i32, %c8_i32 : i32
    %9 = tpu.assume_multiple %8, 8 : i32
    %c0_10 = arith.constant 0 : index
    %10 = arith.index_cast %9 : i32 to index
    %c0_11 = arith.constant 0 : index
    %11 = vector.load %arg1[%c0_10, %10, %c0_11] : memref<2x8x32xf32, #tpu.memory_space<vmem>>, vector<2x8x32xf32>
    %12 = vector.shape_cast %0 : vector<1x32xf32> to vector<1x1x32xf32>
    %13 = vector.broadcast %12 : vector<1x1x32xf32> to vector<2x8x32xf32>
    %14 = arith.mulf %11, %13 : vector<2x8x32xf32>
    %cst_12 = arith.constant dense<0.000000e+00> : vector<2x8xf32>
    %15 = vector.multi_reduction <add>, %14, %cst_12 [2] : vector<2x8x32xf32> to vector<2x8xf32>
    %16 = vector.broadcast %1 : f32 to vector<2x8xf32>
    %17 = arith.addf %15, %16 : vector<2x8xf32>
    %c0_13 = arith.constant 0 : index
    %c0_14 = arith.constant 0 : index
    %18 = vector.load %arg5[%c0_13, %c0_14] : memref<2x1xf32, #tpu.memory_space<vmem>>, vector<2x1xf32>
    %cst_15 = arith.constant dense<0xFF800000> : vector<2xf32>
    %19 = vector.multi_reduction <maximumf>, %17, %cst_15 [1] : vector<2x8xf32> to vector<2xf32>
    %20 = vector.shape_cast %19 : vector<2xf32> to vector<2x1xf32>
    %21 = arith.maximumf %18, %20 : vector<2x1xf32>
    %22 = arith.subf %18, %21 : vector<2x1xf32>
    %23 = math.exp %22 : vector<2x1xf32>
    %24 = vector.broadcast %21 : vector<2x1xf32> to vector<2x8xf32>
    %25 = arith.subf %17, %24 : vector<2x8xf32>
    %26 = math.exp %25 : vector<2x8xf32>
    %c0_16 = arith.constant 0 : index
    %c0_17 = arith.constant 0 : index
    %27 = vector.load %arg6[%c0_16, %c0_17] : memref<2x1xf32, #tpu.memory_space<vmem>>, vector<2x1xf32>
    %28 = arith.mulf %23, %27 : vector<2x1xf32>
    %cst_18 = arith.constant dense<0.000000e+00> : vector<2xf32>
    %29 = vector.multi_reduction <add>, %26, %cst_18 [1] : vector<2x8xf32> to vector<2xf32>
    %30 = vector.shape_cast %29 : vector<2xf32> to vector<2x1xf32>
    %31 = arith.addf %28, %30 : vector<2x1xf32>
    %c0_19 = arith.constant 0 : index
    %c0_20 = arith.constant 0 : index
    %32 = vector.load %arg6[%c0_19, %c0_20] : memref<2x1xf32, #tpu.memory_space<vmem>>, vector<2x1xf32>
    tpu.vector_store %arg6[%c0_19, %c0_20], %31 {strides = array<i32>} : memref<2x1xf32, #tpu.memory_space<vmem>>, vector<2x1xf32>,
    %c0_21 = arith.constant 0 : index
    %c0_22 = arith.constant 0 : index
    %33 = vector.load %arg7[%c0_21, %c0_22] : memref<2x32xf32, #tpu.memory_space<vmem>>, vector<2x32xf32>
    %34 = vector.broadcast %23 : vector<2x1xf32> to vector<2x32xf32>
    %35 = arith.mulf %34, %33 : vector<2x32xf32>
    %36 = vector.shape_cast %26 : vector<2x8xf32> to vector<2x8x1xf32>
    %37 = vector.broadcast %36 : vector<2x8x1xf32> to vector<2x8x32xf32>
    %38 = arith.mulf %37, %11 : vector<2x8x32xf32>
    %cst_23 = arith.constant dense<0.000000e+00> : vector<2x32xf32>
    %39 = vector.multi_reduction <add>, %38, %cst_23 [1] : vector<2x8x32xf32> to vector<2x32xf32>
    %40 = arith.addf %35, %39 : vector<2x32xf32>
    %c0_24 = arith.constant 0 : index
    %c0_25 = arith.constant 0 : index
    %41 = vector.load %arg7[%c0_24, %c0_25] : memref<2x32xf32, #tpu.memory_space<vmem>>, vector<2x32xf32>
    tpu.vector_store %arg7[%c0_24, %c0_25], %40 {strides = array<i32>} : memref<2x32xf32, #tpu.memory_space<vmem>>, vector<2x32xf32>,
    %c0_26 = arith.constant 0 : index
    %c0_27 = arith.constant 0 : index
    %42 = vector.load %arg5[%c0_26, %c0_27] : memref<2x1xf32, #tpu.memory_space<vmem>>, vector<2x1xf32>
    tpu.vector_store %arg5[%c0_26, %c0_27], %21 {strides = array<i32>} : memref<2x1xf32, #tpu.memory_space<vmem>>, vector<2x1xf32>,
    %c1_i32 = arith.constant 1 : i32
    %c0_28 = arith.constant 0 : index
    %c0_29 = arith.constant 0 : index
    %43 = vector.load %arg7[%c0_28, %c0_29] : memref<2x32xf32, #tpu.memory_space<vmem>>, vector<2x32xf32>
    %c0_30 = arith.constant 0 : index
    %c0_31 = arith.constant 0 : index
    %44 = vector.load %arg6[%c0_30, %c0_31] : memref<2x1xf32, #tpu.memory_space<vmem>>, vector<2x1xf32>
    %45 = vector.broadcast %44 : vector<2x1xf32> to vector<2x32xf32>
    %46 = arith.divf %43, %45 : vector<2x32xf32>
    %c0_32 = arith.constant 0 : index
    %c0_33 = arith.constant 0 : index
    %47 = vector.load %arg4[%c0_32, %c0_33] : memref<2x32xf32, #tpu.memory_space<vmem>>, vector<2x32xf32>
    tpu.vector_store %arg4[%c0_32, %c0_33], %46 {strides = array<i32>} : memref<2x32xf32, #tpu.memory_space<vmem>>, vector<2x32xf32>,
    return
  }
  func.func @transform_0(%arg0: i32) -> (i32, i32, i32) {
    %c0_i32 = arith.constant 0 : i32
    %c0_i32_0 = arith.constant 0 : i32
    %c0_i32_1 = arith.constant 0 : i32
    return %arg0, %c0_i32, %c0_i32_0 : i32, i32, i32
  }
  func.func @transform_1(%arg0: i32) -> (i32, i32) {
    %c0_i32 = arith.constant 0 : i32
    %c0_i32_0 = arith.constant 0 : i32
    %c0_i32_1 = arith.constant 0 : i32
    return %c0_i32, %c0_i32_0 : i32, i32
  }
  func.func @transform_2(%arg0: i32) -> i32 {
    %c0_i32 = arith.constant 0 : i32
    %c0_i32_0 = arith.constant 0 : i32
    return %c0_i32 : i32
  }
  func.func @transform_3(%arg0: i32) -> (i32, i32) {
    %c0_i32 = arith.constant 0 : i32
    %c0_i32_0 = arith.constant 0 : i32
    return %arg0, %c0_i32 : i32, i32
  }
}

</mosaic_0001>

<llo_original>
// kernel: tpu_custom_call.1
$region0: #{tpu_custom_call.1}
  #allocation0 [shape = 'u32[]', space=smem, size = 0x4, offset = 0x4, fixed_abs, tag = 'smem constant byte address 0x4 - core index']
  #allocation1 [shape = 'u32[144,128]{1,0:T(1,128)}', space=vmem, size = 0x12000, scoped, tag = 'internal scratch']
  #allocation2 [shape = 'f32[2,1]{1,0:T(2,128)}', space=vmem, size = 0x400, scoped, tag = 'scratch operand']
  #allocation3 [shape = 'f32[2,1]{1,0:T(2,128)}', space=vmem, size = 0x400, scoped, tag = 'scratch operand']
  #allocation4 [shape = 'f32[2,32]{1,0:T(2,128)}', space=vmem, size = 0x400, scoped, tag = 'scratch operand']
  #allocation5 [shape = 'f32[1]{0:T(128)S(6)}', space=smem, size = 0x200, scoped, tag = 'scoped memory for tpu_custom_call.1']
  %s0 = inlined_call_operand.hbm [shape: f32[2,8,32], index: 0, kind: input, shape index: {}]
  %s1 = inlined_call_operand.vmem [shape: f32[1,32], index: 1, kind: input, shape index: {}]
  %s2 = inlined_call_operand.<no memory space> [shape: f32[1], index: 2, kind: input, shape index: {}]
  %s3 = inlined_call_operand.hbm [shape: f32[2,32], index: 3, kind: output, shape index: {}]
  %s4 = sld [smem:[#allocation0]]
  $region26: #{tpu_custom_call.1} parent=0
    _
  %s6 = ssub.s32 1, %s4
  %s7 = scalar_select 0, %s6, %s4
  %8 = sst [smem:[#allocation5]] %s2
  $region1: #{tpu_custom_call.1} parent=0
    #allocation6 [shape = 'u8[8192]{0}', space=vmem, size = 0x2000, scoped, tag = 'input window, operand 0, single buffered']
    #allocation7 [shape = 's32[1]{0}', space=sflag, size = 0x4, scoped, tag = 'scoped memory for tpu_custom_call.1']
    #allocation8 [shape = 's32[1]{0}', space=sflag, size = 0x4, scoped, tag = 'scoped memory for tpu_custom_call.1']
    #allocation9 [shape = 'u8[1024]{0}', space=vmem, size = 0x400, scoped, tag = 'output window, operand 0, single buffered']
    %9 = vsyncpa [#allocation7], 0
    %10 = vsyncpa [#allocation8], 0
    // Predicated region
    $region2: #{tpu_custom_call.1} parent=1 // pred_check
      _
    $region3: #{tpu_custom_call.1} parent=1 // pred_check_branch
      %12 = sbr.rel (0) target = $region5
    $region4: #{tpu_custom_call.1} parent=1 // pred_region
      %s14 = ssub.s32 256, 256
      %15 = vsyncadd [#allocation7], %s14
      %s16 = sshll.u32 [#allocation6], 4
      %s17 = int_to_ptr.vmem [resolvable:$true] %s16
      %22 = dma.hbm_to_vmem [thread:$0]  %s0, 256, %s17, [#allocation7], 128, 128, 8
    $region5: #{tpu_custom_call.1} parent=1 // pred_fallthru
      _
    // Predicated region
    $region6: #{tpu_custom_call.1} parent=1 // pred_check
      _
    $region7: #{tpu_custom_call.1} parent=1 // pred_check_branch
      %24 = sbr.rel (0) target = $region9
    $region8: #{tpu_custom_call.1} parent=1 // pred_region
      _
    $region9: #{tpu_custom_call.1} parent=1 // pred_fallthru
      _
    // Predicated region
    $region10: #{tpu_custom_call.1} parent=1 // pred_check
      _
    $region11: #{tpu_custom_call.1} parent=1 // pred_check_branch
      %26 = sbr.rel (0) target = $region13
    $region12: #{tpu_custom_call.1} parent=1 // pred_region
      _
    $region13: #{tpu_custom_call.1} parent=1 // pred_fallthru
      _
    // Predicated region
    $region14: #{tpu_custom_call.1} parent=1 // pred_check
      _
    $region15: #{tpu_custom_call.1} parent=1 // pred_check_branch
      %28 = sbr.rel (0) target = $region17
    $region16: #{tpu_custom_call.1} parent=1 // pred_region
      %29 = dma.done [#allocation7], 256
    $region17: #{tpu_custom_call.1} parent=1 // pred_fallthru
      _
    %v30 = vld [vmem:[%s1] sm:$0x1]
    %s31 = sld [smem:[#allocation5]]
    %vm32 = vcmask 1024
    %33 = vst.msk [vmem:[#allocation2] sm:$0x3] %vm32, -inf
    %34 = vst.msk [vmem:[#allocation3] sm:$0x3] %vm32, 0.0
    %vm35 = vcmask 254976
    %36 = vst.msk [vmem:[#allocation4] sm:$0x3] %vm35, 0.0
    %v37 = vld [vmem:[#allocation6] sm:$0xff]
    %v38 = vld [vmem:[#allocation6 + $0x8] sm:$0xff]
    %v40 = vlaneseq
    %v41 = vshrl.u32 %v40, 7
    %v42 = vsub.s32 0, %v41
    %v43 = vrot.slane %v30, %v42
    %v45 = vmul.f32 %v37, %v43
    %v46 = vmul.f32 %v38, %v43
    %vm47 = vcmask 261120
    %v48 = vsel %vm47, %v45, 0.0
    %49 = vadd.xlane.f32.xlu0 %v48
    %v50 = vpop.xlane.xlu0 %49
    %v51 = vsel %vm47, %v46, 0.0
    %52 = vadd.xlane.f32.xlu0 %v51
    %v53 = vpop.xlane.xlu0 %52
    %v54 = vstv %s31
    %v55 = vadd.f32 %v50, %v54
    %v56 = vadd.f32 %v53, %v54
    %v57 = vld [vmem:[#allocation2] sm:$0x3]
    %v60 = vlaneseq
    %v61 = vand.u32 %v60, 127
    %v62 = vlaneseq
    %v63 = vshrl.u32 %v62, 7
    %v64 = vsub.s32 %v61, %v63
    %v65 = vrot.slane %v55, %v64
    %v66 = vlaneseq
    %v67 = vshrl.u32 %v66, 7
    %v68 = vsub.s32 %v61, %v67
    %v69 = vrot.slane %v56, %v68
    %vm70 = vcmask 1041409
    %v71 = vsel %vm70, %v69, %v65
    %vm73 = vcmask 58368
    %v74 = vsel %vm73, %v71, -inf
    %75 = vmax.xlane.f32.xlu0 %v74
    %v76 = vpop.xlane.xlu0 %75
    %v77 = vmax.f32 %v57, %v76
    %v78 = vsub.f32 %v57, %v77
    %v79 = vmul.f32 %v78, 1.442695
    %v80 = vpow.pop %v79
    %82 = vset.pattern.permute.xlu0 0
    %83 = vperm.xlu0 %82, %v77
    %v84 = vpop.permute.xlu0 %83
    %v85 = vlaneseq
    %v86 = vshrl.u32 %v85, 7
    %v87 = vsub.s32 0, %v86
    %v88 = vrot.slane %v84, %v87
    %v89 = vlaneseq
    %v90 = vshrl.u32 %v89, 7
    %v91 = vsub.s32 1, %v90
    %v92 = vrot.slane %v84, %v91
    %v95 = vsub.f32 %v55, %v88
    %v96 = vsub.f32 %v56, %v92
    %v97 = vmul.f32 %v95, 1.442695
    %v98 = vpow.pop %v97
    %v99 = vmul.f32 %v96, 1.442695
    %v100 = vpow.pop %v99
    %v101 = vld [vmem:[#allocation3] sm:$0x3]
    %v102 = vmul.f32 %v80, %v101
    %105 = vset.pattern.permute.xlu0 0
    %106 = vperm.xlu0 %105, %v98
    %v107 = vpop.permute.xlu0 %106
    %108 = vset.pattern.permute.xlu0 0
    %109 = vperm.xlu0 %108, %v100
    %v110 = vpop.permute.xlu0 %109
    %v111 = vlaneseq
    %v112 = vshrl.u32 %v111, 7
    %v113 = vsub.s32 %v61, %v112
    %v114 = vrot.slane %v107, %v113
    %v115 = vlaneseq
    %v116 = vshrl.u32 %v115, 7
    %v117 = vsub.s32 %v61, %v116
    %v118 = vrot.slane %v110, %v117
    %v119 = vsel %vm70, %v118, %v114
    %v121 = vsel %vm73, %v119, 0.0
    %122 = vadd.xlane.f32.xlu0 %v121
    %v123 = vpop.xlane.xlu0 %122
    %v124 = vadd.f32 %v102, %v123
    %125 = vst.msk [vmem:[#allocation3] sm:$0x3] %vm32, %v124
    %v126 = vld [vmem:[#allocation4] sm:$0x3]
    %128 = vset.pattern.permute.xlu0 0
    %129 = vperm.xlu0 %128, %v80
    %v130 = vpop.permute.xlu0 %129
    %v132 = vmul.f32 %v130, %v126
    %v135 = vmul.f32 %v107, %v37
    %v136 = vmul.f32 %v110, %v38
    %v137 = vsel %vm47, %v135, 0.0
    %v138 = vrot.slane %v137, 4
    %v139 = vadd.f32 %v137, %v138
    %v140 = vrot.slane %v139, 2
    %v141 = vadd.f32 %v139, %v140
    %v142 = vrot.slane %v141, 1
    %v143 = vadd.f32 %v141, %v142
    %v144 = vsel %vm47, %v136, 0.0
    %v145 = vrot.slane %v144, 4
    %v146 = vadd.f32 %v144, %v145
    %v147 = vrot.slane %v146, 2
    %v148 = vadd.f32 %v146, %v147
    %v149 = vrot.slane %v148, 1
    %v150 = vadd.f32 %v148, %v149
    %v153 = vsel %vm70, %v150, %v143
    %v155 = vadd.f32 %v132, %v153
    %156 = vst.msk [vmem:[#allocation4] sm:$0x3] %vm35, %v155
    %157 = vst.msk [vmem:[#allocation2] sm:$0x3] %vm32, %v77
    %v158 = vld [vmem:[#allocation4] sm:$0x3]
    %v159 = vld [vmem:[#allocation3] sm:$0x3]
    %161 = vset.pattern.permute.xlu0 0
    %162 = vperm.xlu0 %161, %v159
    %v163 = vpop.permute.xlu0 %162
    %v165 = vrcp.pop %v163
    %v166 = vmul.f32 %v158, %v165
    %167 = vst.msk [vmem:[#allocation9] sm:$0x3] %vm35, %v166
    // Predicated region
    $region18: #{tpu_custom_call.1} parent=1 // pred_check
      _
    $region19: #{tpu_custom_call.1} parent=1 // pred_check_branch
      %169 = sbr.rel (0) target = $region21
    $region20: #{tpu_custom_call.1} parent=1 // pred_region
      %s171 = ssub.s32 32, 32
      %172 = vsyncadd [#allocation8], %s171
      %s174 = sshll.u32 [#allocation9], 4
      %s175 = int_to_ptr.vmem [resolvable:$true] %s174
      %177 = dma.vmem_to_hbm [thread:$0]  %s175, 32, %s3, [#allocation8]
    $region21: #{tpu_custom_call.1} parent=1 // pred_fallthru
      _
    // Predicated region
    $region22: #{tpu_custom_call.1} parent=1 // pred_check
      _
    $region23: #{tpu_custom_call.1} parent=1 // pred_check_branch
      %179 = sbr.rel (0) target = $region25
    $region24: #{tpu_custom_call.1} parent=1 // pred_region
      %180 = dma.done [#allocation8], 32
    $region25: #{tpu_custom_call.1} parent=1 // pred_fallthru
      _
    %181 = vsyncpa [#allocation7], 1
    %182 = vsyncpa [#allocation8], 1

</llo_original>
